<compile_context>
chip_gen: v5e
topology: v5e:2x2
jax: 0.10.0
libtpu: 0.0.40
codegen_flags: <defaults>
</compile_context>

<pallas_src>
import jax
import jax.numpy as jnp
from jax.experimental import pallas as pl
from jax.experimental.pallas import tpu as pltpu

LANE = 128  # TPU lane width; feature dims are zero-padded to this.


# ----------------------------- fused Pallas kernel -----------------------------

def _gae_fused_kernel(a01_ref, a_ref, f01_ref, wcat_ref, b_ref,
                      xh_ref, h0_ref, h1_ref):
    """Whole GAE forward in one body; everything stays resident in VMEM."""
    n = a_ref.shape[0]  # static per-graph node count

    def prop(a, d, x):
        # relu( D^-1/2 (A+I) D^-1/2 @ x ) without building the normalized A:
        #   u = d*x ; t = A@u + u (self loop) ; out = relu(d*t)
        u = d * x
        t = jnp.dot(a, u, preferred_element_type=jnp.float32) + u
        return jnp.maximum(d * t, 0.0)

    # ---- two view GCNs, batched via the block-diagonal adjacency ----------
    a01 = a01_ref[...]                                               # [2N, 2N]
    d01 = jax.lax.rsqrt(jnp.sum(a01, axis=1, keepdims=True) + 1.0)   # deg >= 1
    h = prop(a01, d01, prop(a01, d01, f01_ref[...]))                 # [2N, LANE]
    h0 = h[:n, :]
    h1 = h[n:, :]
    h0_ref[...] = h0
    h1_ref[...] = h1

    # ---- FeatureFusion (0.5 folded into wcat/b): one K=256 MXU matmul -----
    hc = jnp.concatenate([h0, h1], axis=1)                           # [N, 2*LANE]
    z = jnp.dot(hc, wcat_ref[...], preferred_element_type=jnp.float32) + b_ref[...]

    # ---- final GCN on the fused features -----------------------------------
    a = a_ref[...]                                                   # [N, N]
    d = jax.lax.rsqrt(jnp.sum(a, axis=1, keepdims=True) + 1.0)
    xh_ref[...] = prop(a, d, prop(a, d, z))


# ------------------------------- wrappers (JAX) --------------------------------

def prepare_gae_params(params):
    """Pad + fold FeatureFusion constants ONCE (hoisted out of the forward).

    Returns wcat [2*LANE, LANE] = vstack(0.5*W1_padded, 0.5*W2_padded) and
    b [1, LANE] = 0.5*(b1 + b2) zero-padded.  Zero rows/cols keep the padded
    math exact.
    """
    f32 = jnp.float32
    w1 = params["w1"].astype(f32)
    w2 = params["w2"].astype(f32)
    b1 = params["b1"].astype(f32)
    b2 = params["b2"].astype(f32)
    d0, size = w1.shape
    d1 = w2.shape[0]
    assert d0 <= LANE and d1 <= LANE and size <= LANE
    wcat = jnp.zeros((2 * LANE, LANE), f32)
    wcat = wcat.at[:d0, :size].set(0.5 * w1)
    wcat = wcat.at[LANE:LANE + d1, :size].set(0.5 * w2)
    b = jnp.zeros((1, LANE), f32).at[:, :size].set(0.5 * (b1 + b2))
    return {"wcat": wcat, "b": b}


def gae_forward(prep, adj0, adj1, feat0, feat1, adj, *, out_dim):
    n = adj0.shape[0]
    d0, d1 = feat0.shape[1], feat1.shape[1]
    f32 = jnp.float32

    # Block-diagonal packing of the two (independent) view graphs so both view
    # GCNs run as a single MXU matmul per layer; features stacked + lane-padded.
    a01 = jnp.zeros((2 * n, 2 * n), f32)
    a01 = a01.at[:n, :n].set(adj0.astype(f32))
    a01 = a01.at[n:, n:].set(adj1.astype(f32))
    f01 = jnp.zeros((2 * n, LANE), f32)
    f01 = f01.at[:n, :d0].set(feat0.astype(f32))
    f01 = f01.at[n:, :d1].set(feat1.astype(f32))

    flops = (2 * 2 * (2 * n) * (2 * n) * LANE        # two view-GCN layers (block-diag)
             + 2 * n * (2 * LANE) * LANE             # fused FeatureFusion matmul
             + 2 * 2 * n * n * LANE)                 # two final-GCN layers
    in_bytes = 4 * (4 * n * n + n * n + 2 * n * LANE + 2 * LANE * LANE + LANE)
    out_bytes = 4 * 3 * n * LANE
    cost = pl.CostEstimate(flops=flops, transcendentals=3 * n,
                           bytes_accessed=in_bytes + out_bytes)

    vmem = pl.BlockSpec(memory_space=pltpu.MemorySpace.VMEM)
    xh_p, h0_p, h1_p = pl.pallas_call(
        _gae_fused_kernel,
        out_shape=(jax.ShapeDtypeStruct((n, LANE), f32),) * 3,   # padded (xh, h0, h1)
        in_specs=[vmem] * 5,
        out_specs=(vmem,) * 3,
        cost_estimate=cost,
    )(a01, adj.astype(f32), f01, prep["wcat"], prep["b"])

    # Slice the lane-padded slabs back to the module's real output widths
    # (kept for API parity; consumers that accept padded slabs can skip this).
    return xh_p[:, :out_dim], h0_p[:, :d0], h1_p[:, :d1]


gae_forward_jit = jax.jit(gae_forward, static_argnames=("out_dim",))


def init_gae_params(key, in_dim, hidden_dims_v):
    """Deterministic init mimicking nn.Linear shapes (stored as [in, out])."""
    size = hidden_dims_v[1]
    k1, k2, k3, k4 = jax.random.split(key, 4)
    lim1 = 1.0 / jnp.sqrt(in_dim[0])
    lim2 = 1.0 / jnp.sqrt(in_dim[1])
    return {
        "w1": jax.random.uniform(k1, (in_dim[0], size), jnp.float32, -lim1, lim1),
        "b1": jax.random.uniform(k2, (1, size), jnp.float32, -lim1, lim1),
        "w2": jax.random.uniform(k3, (in_dim[1], size), jnp.float32, -lim2, lim2),
        "b2": jax.random.uniform(k4, (1, size), jnp.float32, -lim2, lim2),
    }


# -------------------------------- reference -----------------------------------

def gae_forward_ref(params, adj0, adj1, feat0, feat1, adj):
    def normalize(a):
        n = a.shape[0]
        a_hat = a + jnp.eye(n, dtype=a.dtype)
        deg = a_hat.sum(axis=1)
        d = jnp.where(deg > 0, jax.lax.rsqrt(deg), 0.0)
        return d[:, None] * a_hat * d[None, :]

    def prop(qn, x):
        return jnp.maximum(qn @ x, 0.0)

    def gcn(qn, x):
        return prop(qn, prop(qn, x))

    qn0, qn1, qn = (normalize(a) for a in (adj0, adj1, adj))
    h0 = gcn(qn0, feat0)
    h1 = gcn(qn1, feat1)
    z1 = h0 @ params["w1"] + params["b1"]
    z2 = h1 @ params["w2"] + params["b2"]
    xh = gcn(qn, 0.5 * z1 + 0.5 * z2)
    return xh, h0, h1


# ----------------------------------- main --------------------------------------

if __name__ == "__main__":
    key = jax.random.PRNGKey(0)
    N = 32                          # number of graph nodes
    in_dim = (16, 24)               # per-view feature dims
    hidden_dims_v = (64, 32)        # fusion output size = hidden_dims_v[1]

    k_a0, k_a1, k_a, k_f0, k_f1, k_p = jax.random.split(key, 6)

    def rand_sym_adj(k, n):
        m = (jax.random.uniform(k, (n, n)) < 0.2).astype(jnp.float32)
        m = jnp.maximum(m, m.T)                    # symmetric (undirected graph)
        return m * (1.0 - jnp.eye(n))              # no self loops (added in-kernel)

    adj0 = rand_sym_adj(k_a0, N)
    adj1 = rand_sym_adj(k_a1, N)
    adj = rand_sym_adj(k_a, N)
    feat0 = jax.random.normal(k_f0, (N, in_dim[0]), jnp.float32)
    feat1 = jax.random.normal(k_f1, (N, in_dim[1]), jnp.float32)

    params = init_gae_params(k_p, in_dim, hidden_dims_v)
    prep = prepare_gae_params(params)              # padding/folding done once

    xh, h0, h1 = gae_forward_jit(prep, adj0, adj1, feat0, feat1, adj,
                                 out_dim=hidden_dims_v[1])
    jax.block_until_ready((xh, h0, h1))

    xh_r, h0_r, h1_r = gae_forward_ref(params, adj0, adj1, feat0, feat1, adj)
    assert xh.shape == (N, hidden_dims_v[1])
    assert h0.shape == (N, in_dim[0]) and h1.shape == (N, in_dim[1])
    assert jnp.allclose(xh, xh_r, atol=1e-4, rtol=1e-4)
    assert jnp.allclose(h0, h0_r, atol=1e-4, rtol=1e-4)
    assert jnp.allclose(h1, h1_r, atol=1e-4, rtol=1e-4)

    print("KERNEL_OK")
</pallas_src>

<mosaic_0001>
module attributes {stable_mosaic.version = 11 : i64} {
  func.func @_gae_fused_kernel(%arg0: memref<64x64xf32, #tpu.memory_space<vmem>>, %arg1: memref<32x32xf32, #tpu.memory_space<vmem>>, %arg2: memref<64x128xf32, #tpu.memory_space<vmem>>, %arg3: memref<256x128xf32, #tpu.memory_space<vmem>>, %arg4: memref<1x128xf32, #tpu.memory_space<vmem>>, %arg5: memref<32x128xf32, #tpu.memory_space<vmem>>, %arg6: memref<32x128xf32, #tpu.memory_space<vmem>>, %arg7: memref<32x128xf32, #tpu.memory_space<vmem>>) attributes {dimension_semantics = [], scalar_prefetch = 0 : i64, scratch_operands = 0 : i64, tpu.core_type = #tpu.core_type<tc>} {
    %c0 = arith.constant 0 : index
    %c0_0 = arith.constant 0 : index
    %0 = vector.load %arg0[%c0, %c0_0] : memref<64x64xf32, #tpu.memory_space<vmem>>, vector<64x64xf32>
    %cst = arith.constant dense<0.000000e+00> : vector<64xf32>
    %1 = vector.multi_reduction <add>, %0, %cst [1] : vector<64x64xf32> to vector<64xf32>
    %2 = vector.shape_cast %1 : vector<64xf32> to vector<64x1xf32>
    %cst_1 = arith.constant 1.000000e+00 : f32
    %3 = vector.broadcast %cst_1 : f32 to vector<64x1xf32>
    %4 = arith.addf %2, %3 : vector<64x1xf32>
    %5 = math.rsqrt %4 : vector<64x1xf32>
    %c0_2 = arith.constant 0 : index
    %c0_3 = arith.constant 0 : index
    %6 = vector.load %arg2[%c0_2, %c0_3] : memref<64x128xf32, #tpu.memory_space<vmem>>, vector<64x128xf32>
    %7 = vector.broadcast %5 : vector<64x1xf32> to vector<64x128xf32>
    %8 = arith.mulf %7, %6 : vector<64x128xf32>
    %cst_4 = arith.constant dense<0.000000e+00> : vector<64x128xf32>
    %9 = tpu.matmul %0, %8, %cst_4 {dimension_numbers = #tpu.dot_dimension_numbers<[1], [0], [0], [1], [0, 0, 1, 1], [], []>} : vector<64x64xf32>, vector<64x128xf32>, vector<64x128xf32> -> vector<64x128xf32>
    %10 = arith.addf %9, %8 : vector<64x128xf32>
    %11 = vector.broadcast %5 : vector<64x1xf32> to vector<64x128xf32>
    %12 = arith.mulf %11, %10 : vector<64x128xf32>
    %cst_5 = arith.constant 0.000000e+00 : f32
    %13 = vector.broadcast %cst_5 : f32 to vector<64x128xf32>
    %14 = arith.maximumf %12, %13 : vector<64x128xf32>
    %15 = vector.broadcast %5 : vector<64x1xf32> to vector<64x128xf32>
    %16 = arith.mulf %15, %14 : vector<64x128xf32>
    %cst_6 = arith.constant dense<0.000000e+00> : vector<64x128xf32>
    %17 = tpu.matmul %0, %16, %cst_6 {dimension_numbers = #tpu.dot_dimension_numbers<[1], [0], [0], [1], [0, 0, 1, 1], [], []>} : vector<64x64xf32>, vector<64x128xf32>, vector<64x128xf32> -> vector<64x128xf32>
    %18 = arith.addf %17, %16 : vector<64x128xf32>
    %19 = vector.broadcast %5 : vector<64x1xf32> to vector<64x128xf32>
    %20 = arith.mulf %19, %18 : vector<64x128xf32>
    %cst_7 = arith.constant 0.000000e+00 : f32
    %21 = vector.broadcast %cst_7 : f32 to vector<64x128xf32>
    %22 = arith.maximumf %20, %21 : vector<64x128xf32>
    %23 = vector.extract_strided_slice %22 {offsets = [0, 0], sizes = [32, 128], strides = [1, 1]} : vector<64x128xf32> to vector<32x128xf32>
    %24 = vector.extract_strided_slice %22 {offsets = [32, 0], sizes = [32, 128], strides = [1, 1]} : vector<64x128xf32> to vector<32x128xf32>
    %c0_8 = arith.constant 0 : index
    %c0_9 = arith.constant 0 : index
    %25 = vector.load %arg6[%c0_8, %c0_9] : memref<32x128xf32, #tpu.memory_space<vmem>>, vector<32x128xf32>
    tpu.vector_store %arg6[%c0_8, %c0_9], %23 {strides = array<i32>} : memref<32x128xf32, #tpu.memory_space<vmem>>, vector<32x128xf32>,
    %c0_10 = arith.constant 0 : index
    %c0_11 = arith.constant 0 : index
    %26 = vector.load %arg7[%c0_10, %c0_11] : memref<32x128xf32, #tpu.memory_space<vmem>>, vector<32x128xf32>
    tpu.vector_store %arg7[%c0_10, %c0_11], %24 {strides = array<i32>} : memref<32x128xf32, #tpu.memory_space<vmem>>, vector<32x128xf32>,
    %27 = tpu.concatenate %23, %24 in 1 : vector<32x128xf32>, vector<32x128xf32> -> vector<32x256xf32>
    %c0_12 = arith.constant 0 : index
    %c0_13 = arith.constant 0 : index
    %28 = vector.load %arg3[%c0_12, %c0_13] : memref<256x128xf32, #tpu.memory_space<vmem>>, vector<256x128xf32>
    %cst_14 = arith.constant dense<0.000000e+00> : vector<32x128xf32>
    %29 = tpu.matmul %27, %28, %cst_14 {dimension_numbers = #tpu.dot_dimension_numbers<[1], [0], [0], [1], [0, 0, 1, 1], [], []>} : vector<32x256xf32>, vector<256x128xf32>, vector<32x128xf32> -> vector<32x128xf32>
    %c0_15 = arith.constant 0 : index
    %c0_16 = arith.constant 0 : index
    %30 = vector.load %arg4[%c0_15, %c0_16] : memref<1x128xf32, #tpu.memory_space<vmem>>, vector<1x128xf32>
    %31 = vector.broadcast %30 : vector<1x128xf32> to vector<32x128xf32>
    %32 = arith.addf %29, %31 : vector<32x128xf32>
    %c0_17 = arith.constant 0 : index
    %c0_18 = arith.constant 0 : index
    %33 = vector.load %arg1[%c0_17, %c0_18] : memref<32x32xf32, #tpu.memory_space<vmem>>, vector<32x32xf32>
    %cst_19 = arith.constant dense<0.000000e+00> : vector<32xf32>
    %34 = vector.multi_reduction <add>, %33, %cst_19 [1] : vector<32x32xf32> to vector<32xf32>
    %35 = vector.shape_cast %34 : vector<32xf32> to vector<32x1xf32>
    %cst_20 = arith.constant 1.000000e+00 : f32
    %36 = vector.broadcast %cst_20 : f32 to vector<32x1xf32>
    %37 = arith.addf %35, %36 : vector<32x1xf32>
    %38 = math.rsqrt %37 : vector<32x1xf32>
    %39 = vector.broadcast %38 : vector<32x1xf32> to vector<32x128xf32>
    %40 = arith.mulf %39, %32 : vector<32x128xf32>
    %cst_21 = arith.constant dense<0.000000e+00> : vector<32x128xf32>
    %41 = tpu.matmul %33, %40, %cst_21 {dimension_numbers = #tpu.dot_dimension_numbers<[1], [0], [0], [1], [0, 0, 1, 1], [], []>} : vector<32x32xf32>, vector<32x128xf32>, vector<32x128xf32> -> vector<32x128xf32>
    %42 = arith.addf %41, %40 : vector<32x128xf32>
    %43 = vector.broadcast %38 : vector<32x1xf32> to vector<32x128xf32>
    %44 = arith.mulf %43, %42 : vector<32x128xf32>
    %cst_22 = arith.constant 0.000000e+00 : f32
    %45 = vector.broadcast %cst_22 : f32 to vector<32x128xf32>
    %46 = arith.maximumf %44, %45 : vector<32x128xf32>
    %47 = vector.broadcast %38 : vector<32x1xf32> to vector<32x128xf32>
    %48 = arith.mulf %47, %46 : vector<32x128xf32>
    %cst_23 = arith.constant dense<0.000000e+00> : vector<32x128xf32>
    %49 = tpu.matmul %33, %48, %cst_23 {dimension_numbers = #tpu.dot_dimension_numbers<[1], [0], [0], [1], [0, 0, 1, 1], [], []>} : vector<32x32xf32>, vector<32x128xf32>, vector<32x128xf32> -> vector<32x128xf32>
    %50 = arith.addf %49, %48 : vector<32x128xf32>
    %51 = vector.broadcast %38 : vector<32x1xf32> to vector<32x128xf32>
    %52 = arith.mulf %51, %50 : vector<32x128xf32>
    %cst_24 = arith.constant 0.000000e+00 : f32
    %53 = vector.broadcast %cst_24 : f32 to vector<32x128xf32>
    %54 = arith.maximumf %52, %53 : vector<32x128xf32>
    %c0_25 = arith.constant 0 : index
    %c0_26 = arith.constant 0 : index
    %55 = vector.load %arg5[%c0_25, %c0_26] : memref<32x128xf32, #tpu.memory_space<vmem>>, vector<32x128xf32>
    tpu.vector_store %arg5[%c0_25, %c0_26], %54 {strides = array<i32>} : memref<32x128xf32, #tpu.memory_space<vmem>>, vector<32x128xf32>,
    return
  }
}

</mosaic_0001>

<llo_original>
// kernel: gae_forward.1
$region0: #{gae_forward.1}
  #allocation0 [shape = 'u32[]', space=smem, size = 0x4, offset = 0x4, fixed_abs, tag = 'smem constant byte address 0x4 - core index']
  #allocation1 [shape = 'u32[72,128]{1,0:T(1,128)}', space=vmem, size = 0x9000, scoped, tag = 'internal scratch']
  %s0 = inlined_call_operand.vmem [shape: f32[64,64], index: 0, kind: input, shape index: {}]
  %s1 = inlined_call_operand.vmem [shape: f32[32,32], index: 1, kind: input, shape index: {}]
  %s2 = inlined_call_operand.vmem [shape: f32[64,128], index: 2, kind: input, shape index: {}]
  %s3 = inlined_call_operand.vmem [shape: f32[256,128], index: 3, kind: input, shape index: {}]
  %s4 = inlined_call_operand.vmem [shape: f32[1,128], index: 4, kind: input, shape index: {}]
  %s5 = inlined_call_operand.hbm [shape: f32[32,128], index: 5, kind: output, shape index: {0}]
  %s6 = inlined_call_operand.vmem [shape: f32[32,128], index: 6, kind: output, shape index: {1}]
  %s7 = inlined_call_operand.vmem [shape: f32[32,128], index: 7, kind: output, shape index: {2}]
  %8 = xla_tuple %s5, %s6, %s7
  %s9 = sld [smem:[#allocation0]]
  $region46: #{gae_forward.1} parent=0
    _
  %s11 = ssub.s32 1, %s9
  %s12 = scalar_select 0, %s11, %s9
  $region1: #{gae_forward.1} parent=0
    #allocation2 [shape = 'u8[16384]{0}', space=vmem, size = 0x4000, scoped, tag = 'output window, operand 0, single buffered']
    #allocation3 [shape = 's32[1]{0}', space=sflag, size = 0x4, scoped, tag = 'scoped memory for gae_forward.1']
    %13 = vsyncpa [#allocation3], 0
    // Predicated region
    $region2: #{gae_forward.1} parent=1 // pred_check
      _
    $region3: #{gae_forward.1} parent=1 // pred_check_branch
      %15 = sbr.rel (0) target = $region5
    $region4: #{gae_forward.1} parent=1 // pred_region
      _
    $region5: #{gae_forward.1} parent=1 // pred_fallthru
      _
    // Predicated region
    $region6: #{gae_forward.1} parent=1 // pred_check
      _
    $region7: #{gae_forward.1} parent=1 // pred_check_branch
      %17 = sbr.rel (0) target = $region9
    $region8: #{gae_forward.1} parent=1 // pred_region
      _
    $region9: #{gae_forward.1} parent=1 // pred_fallthru
      _
    // Predicated region
    $region10: #{gae_forward.1} parent=1 // pred_check
      _
    $region11: #{gae_forward.1} parent=1 // pred_check_branch
      %19 = sbr.rel (0) target = $region13
    $region12: #{gae_forward.1} parent=1 // pred_region
      _
    $region13: #{gae_forward.1} parent=1 // pred_fallthru
      _
    // Predicated region
    $region14: #{gae_forward.1} parent=1 // pred_check
      _
    $region15: #{gae_forward.1} parent=1 // pred_check_branch
      %21 = sbr.rel (0) target = $region17
    $region16: #{gae_forward.1} parent=1 // pred_region
      _
    $region17: #{gae_forward.1} parent=1 // pred_fallthru
      _
    // Predicated region
    $region18: #{gae_forward.1} parent=1 // pred_check
      _
    $region19: #{gae_forward.1} parent=1 // pred_check_branch
      %23 = sbr.rel (0) target = $region21
    $region20: #{gae_forward.1} parent=1 // pred_region
      _
    $region21: #{gae_forward.1} parent=1 // pred_fallthru
      _
    %v24 = vld [vmem:[%s0] sm:$0xff]
    %v25 = vld [vmem:[%s0 + $0x8] sm:$0xff]
    %v26 = vld [vmem:[%s0 + $0x10] sm:$0xff]
    %v27 = vld [vmem:[%s0 + $0x18] sm:$0xff]
    %v28 = vld [vmem:[%s0 + $0x20] sm:$0xff]
    %v29 = vld [vmem:[%s0 + $0x28] sm:$0xff]
    %v30 = vld [vmem:[%s0 + $0x30] sm:$0xff]
    %v31 = vld [vmem:[%s0 + $0x38] sm:$0xff]
    %vm32 = vcmask 523264
    %v33 = vsel %vm32, %v24, 0.0
    %34 = vadd.xlane.f32.xlu0 %v33
    %v35 = vpop.xlane.xlu0 %34
    %v36 = vsel %vm32, %v25, 0.0
    %37 = vadd.xlane.f32.xlu0 %v36
    %v38 = vpop.xlane.xlu0 %37
    %v39 = vsel %vm32, %v26, 0.0
    %40 = vadd.xlane.f32.xlu0 %v39
    %v41 = vpop.xlane.xlu0 %40
    %v42 = vsel %vm32, %v27, 0.0
    %43 = vadd.xlane.f32.xlu0 %v42
    %v44 = vpop.xlane.xlu0 %43
    %v45 = vsel %vm32, %v28, 0.0
    %46 = vadd.xlane.f32.xlu0 %v45
    %v47 = vpop.xlane.xlu0 %46
    %v48 = vsel %vm32, %v29, 0.0
    %49 = vadd.xlane.f32.xlu0 %v48
    %v50 = vpop.xlane.xlu0 %49
    %v51 = vsel %vm32, %v30, 0.0
    %52 = vadd.xlane.f32.xlu0 %v51
    %v53 = vpop.xlane.xlu0 %52
    %v54 = vsel %vm32, %v31, 0.0
    %55 = vadd.xlane.f32.xlu0 %v54
    %v56 = vpop.xlane.xlu0 %55
    %v57 = vadd.f32 %v35, 1.0
    %v58 = vadd.f32 %v38, 1.0
    %v59 = vadd.f32 %v41, 1.0
    %v60 = vadd.f32 %v44, 1.0
    %v61 = vadd.f32 %v47, 1.0
    %v62 = vadd.f32 %v50, 1.0
    %v63 = vadd.f32 %v53, 1.0
    %v64 = vadd.f32 %v56, 1.0
    %v65 = vrsqrt.pop %v57
    %v66 = vmul.f32 %v65, %v57
    %v67 = vmul.f32 %v66, %v65
    %v68 = vmul.f32 0.5, %v67
    %v69 = vsub.f32 1.5, %v68
    %v70 = vmul.f32 %v65, %v69
    %vm71 = vweird.f32 %v57
    %vm72 = vweird.f32 %v65
    %vm73 = vmor %vm71, %vm72
    %v74 = vsel %vm73, %v65, %v70
    %v75 = vrsqrt.pop %v58
    %v76 = vmul.f32 %v75, %v58
    %v77 = vmul.f32 %v76, %v75
    %v78 = vmul.f32 0.5, %v77
    %v79 = vsub.f32 1.5, %v78
    %v80 = vmul.f32 %v75, %v79
    %vm81 = vweird.f32 %v58
    %vm82 = vweird.f32 %v75
    %vm83 = vmor %vm81, %vm82
    %v84 = vsel %vm83, %v75, %v80
    %v85 = vrsqrt.pop %v59
    %v86 = vmul.f32 %v85, %v59
    %v87 = vmul.f32 %v86, %v85
    %v88 = vmul.f32 0.5, %v87
    %v89 = vsub.f32 1.5, %v88
    %v90 = vmul.f32 %v85, %v89
    %vm91 = vweird.f32 %v59
    %vm92 = vweird.f32 %v85
    %vm93 = vmor %vm91, %vm92
    %v94 = vsel %vm93, %v85, %v90
    %v95 = vrsqrt.pop %v60
    %v96 = vmul.f32 %v95, %v60
    %v97 = vmul.f32 %v96, %v95
    %v98 = vmul.f32 0.5, %v97
    %v99 = vsub.f32 1.5, %v98
    %v100 = vmul.f32 %v95, %v99
    %vm101 = vweird.f32 %v60
    %vm102 = vweird.f32 %v95
    %vm103 = vmor %vm101, %vm102
    %v104 = vsel %vm103, %v95, %v100
    %v105 = vrsqrt.pop %v61
    %v106 = vmul.f32 %v105, %v61
    %v107 = vmul.f32 %v106, %v105
    %v108 = vmul.f32 0.5, %v107
    %v109 = vsub.f32 1.5, %v108
    %v110 = vmul.f32 %v105, %v109
    %vm111 = vweird.f32 %v61
    %vm112 = vweird.f32 %v105
    %vm113 = vmor %vm111, %vm112
    %v114 = vsel %vm113, %v105, %v110
    %v115 = vrsqrt.pop %v62
    %v116 = vmul.f32 %v115, %v62
    %v117 = vmul.f32 %v116, %v115
    %v118 = vmul.f32 0.5, %v117
    %v119 = vsub.f32 1.5, %v118
    %v120 = vmul.f32 %v115, %v119
    %vm121 = vweird.f32 %v62
    %vm122 = vweird.f32 %v115
    %vm123 = vmor %vm121, %vm122
    %v124 = vsel %vm123, %v115, %v120
    %v125 = vrsqrt.pop %v63
    %v126 = vmul.f32 %v125, %v63
    %v127 = vmul.f32 %v126, %v125
    %v128 = vmul.f32 0.5, %v127
    %v129 = vsub.f32 1.5, %v128
    %v130 = vmul.f32 %v125, %v129
    %vm131 = vweird.f32 %v63
    %vm132 = vweird.f32 %v125
    %vm133 = vmor %vm131, %vm132
    %v134 = vsel %vm133, %v125, %v130
    %v135 = vrsqrt.pop %v64
    %v136 = vmul.f32 %v135, %v64
    %v137 = vmul.f32 %v136, %v135
    %v138 = vmul.f32 0.5, %v137
    %v139 = vsub.f32 1.5, %v138
    %v140 = vmul.f32 %v135, %v139
    %vm141 = vweird.f32 %v64
    %vm142 = vweird.f32 %v135
    %vm143 = vmor %vm141, %vm142
    %v144 = vsel %vm143, %v135, %v140
    %v145 = vld [vmem:[%s2] sm:$0xff]
    %v146 = vld [vmem:[%s2 + $0x8] sm:$0xff]
    %v147 = vld [vmem:[%s2 + $0x10] sm:$0xff]
    %v148 = vld [vmem:[%s2 + $0x18] sm:$0xff]
    %v149 = vld [vmem:[%s2 + $0x20] sm:$0xff]
    %v150 = vld [vmem:[%s2 + $0x28] sm:$0xff]
    %v151 = vld [vmem:[%s2 + $0x30] sm:$0xff]
    %v152 = vld [vmem:[%s2 + $0x38] sm:$0xff]
    %v153 = vmul.f32 %v74, %v145
    %v154 = vmul.f32 %v84, %v146
    %v155 = vmul.f32 %v94, %v147
    %v156 = vmul.f32 %v104, %v148
    %v157 = vmul.f32 %v114, %v149
    %v158 = vmul.f32 %v124, %v150
    %v159 = vmul.f32 %v134, %v151
    %v160 = vmul.f32 %v144, %v152
    %v162 = vsel %vm32, %v24, 0
    %v165 = vsel %vm32, %v25, 0
    %v168 = vsel %vm32, %v26, 0
    %v171 = vsel %vm32, %v27, 0
    %v174 = vsel %vm32, %v28, 0
    %v177 = vsel %vm32, %v29, 0
    %v180 = vsel %vm32, %v30, 0
    %v183 = vsel %vm32, %v31, 0
    %185 = vmatpush.msra.mxu0 0.0
    %186 = vmatpush.msra.mxu0 0.0
    %187 = vmatpush.msra.mxu0 0.0
    %188 = vmatpush.msra.mxu0 0.0
    %189 = vmatpush.msra.mxu0 0.0
    %190 = vmatpush.msra.mxu0 0.0
    %191 = vmatpush.msra.mxu0 0.0
    %192 = vmatpush.msra.mxu0 0.0
    %193 = vmatpush.msra.mxu0 %v160
    %194 = vmatpush.msra.mxu0 %v159
    %195 = vmatpush.msra.mxu0 %v158
    %196 = vmatpush.msra.mxu0 %v157
    %197 = vmatpush.msra.mxu0 %v156
    %198 = vmatpush.msra.mxu0 %v155
    %199 = vmatpush.msra.mxu0 %v154
    %200 = vmatpush.msra.mxu0 %v153
    %201 = vmatmul.f32.gmra.mxu0 %v162
    %v202 = vpop.f32.mrf.mxu0
    %v203 = vadd.f32 %v153, %v202
    %204 = vmatmul.f32.gmra.mxu0 %v165
    %v205 = vpop.f32.mrf.mxu0
    %v206 = vadd.f32 %v154, %v205
    %207 = vmatmul.f32.gmra.mxu0 %v168
    %v208 = vpop.f32.mrf.mxu0
    %v209 = vadd.f32 %v155, %v208
    %210 = vmatmul.f32.gmra.mxu0 %v171
    %v211 = vpop.f32.mrf.mxu0
    %v212 = vadd.f32 %v156, %v211
    %213 = vmatmul.f32.gmra.mxu0 %v174
    %v214 = vpop.f32.mrf.mxu0
    %v215 = vadd.f32 %v157, %v214
    %216 = vmatmul.f32.gmra.mxu0 %v177
    %v217 = vpop.f32.mrf.mxu0
    %v218 = vadd.f32 %v158, %v217
    %219 = vmatmul.f32.gmra.mxu0 %v180
    %v220 = vpop.f32.mrf.mxu0
    %v221 = vadd.f32 %v159, %v220
    %222 = vmatmul.f32.gmra.mxu0 %v183
    %v223 = vpop.f32.mrf.mxu0
    %v224 = vadd.f32 %v160, %v223
    %225 = vdwg.mxu0
    %v226 = vmul.f32 %v74, %v203
    %v227 = vmul.f32 %v84, %v206
    %v228 = vmul.f32 %v94, %v209
    %v229 = vmul.f32 %v104, %v212
    %v230 = vmul.f32 %v114, %v215
    %v231 = vmul.f32 %v124, %v218
    %v232 = vmul.f32 %v134, %v221
    %v233 = vmul.f32 %v144, %v224
    %v234 = vmax.f32 %v226, 0.0
    %v235 = vmax.f32 %v227, 0.0
    %v236 = vmax.f32 %v228, 0.0
    %v237 = vmax.f32 %v229, 0.0
    %v238 = vmax.f32 %v230, 0.0
    %v239 = vmax.f32 %v231, 0.0
    %v240 = vmax.f32 %v232, 0.0
    %v241 = vmax.f32 %v233, 0.0
    %v242 = vmul.f32 %v74, %v234
    %v243 = vmul.f32 %v84, %v235
    %v244 = vmul.f32 %v94, %v236
    %v245 = vmul.f32 %v104, %v237
    %v246 = vmul.f32 %v114, %v238
    %v247 = vmul.f32 %v124, %v239
    %v248 = vmul.f32 %v134, %v240
    %v249 = vmul.f32 %v144, %v241
    %250 = vmatpush.msra.mxu0 0.0
    %251 = vmatpush.msra.mxu0 0.0
    %252 = vmatpush.msra.mxu0 0.0
    %253 = vmatpush.msra.mxu0 0.0
    %254 = vmatpush.msra.mxu0 0.0
    %255 = vmatpush.msra.mxu0 0.0
    %256 = vmatpush.msra.mxu0 0.0
    %257 = vmatpush.msra.mxu0 0.0
    %258 = vmatpush.msra.mxu0 %v249
    %259 = vmatpush.msra.mxu0 %v248
    %260 = vmatpush.msra.mxu0 %v247
    %261 = vmatpush.msra.mxu0 %v246
    %262 = vmatpush.msra.mxu0 %v245
    %263 = vmatpush.msra.mxu0 %v244
    %264 = vmatpush.msra.mxu0 %v243
    %265 = vmatpush.msra.mxu0 %v242
    %266 = vmatmul.f32.gmra.mxu0 %v162
    %v267 = vpop.f32.mrf.mxu0
    %v268 = vadd.f32 %v242, %v267
    %269 = vmatmul.f32.gmra.mxu0 %v165
    %v270 = vpop.f32.mrf.mxu0
    %v271 = vadd.f32 %v243, %v270
    %272 = vmatmul.f32.gmra.mxu0 %v168
    %v273 = vpop.f32.mrf.mxu0
    %v274 = vadd.f32 %v244, %v273
    %275 = vmatmul.f32.gmra.mxu0 %v171
    %v276 = vpop.f32.mrf.mxu0
    %v277 = vadd.f32 %v245, %v276
    %278 = vmatmul.f32.gmra.mxu0 %v174
    %v279 = vpop.f32.mrf.mxu0
    %v280 = vadd.f32 %v246, %v279
    %281 = vmatmul.f32.gmra.mxu0 %v177
    %v282 = vpop.f32.mrf.mxu0
    %v283 = vadd.f32 %v247, %v282
    %284 = vmatmul.f32.gmra.mxu0 %v180
    %v285 = vpop.f32.mrf.mxu0
    %v286 = vadd.f32 %v248, %v285
    %287 = vmatmul.f32.gmra.mxu0 %v183
    %v288 = vpop.f32.mrf.mxu0
    %v289 = vadd.f32 %v249, %v288
    %290 = vdwg.mxu0
    %v291 = vmul.f32 %v74, %v268
    %v292 = vmul.f32 %v84, %v271
    %v293 = vmul.f32 %v94, %v274
    %v294 = vmul.f32 %v104, %v277
    %v295 = vmul.f32 %v114, %v280
    %v296 = vmul.f32 %v124, %v283
    %v297 = vmul.f32 %v134, %v286
    %v298 = vmul.f32 %v144, %v289
    %v299 = vmax.f32 %v291, 0.0
    %v300 = vmax.f32 %v292, 0.0
    %v301 = vmax.f32 %v293, 0.0
    %v302 = vmax.f32 %v294, 0.0
    %v303 = vmax.f32 %v295, 0.0
    %v304 = vmax.f32 %v296, 0.0
    %v305 = vmax.f32 %v297, 0.0
    %v306 = vmax.f32 %v298, 0.0
    %307 = vst [vmem:[%s6] sm:$0xff] %v299
    %308 = vst [vmem:[%s6 + $0x8] sm:$0xff] %v300
    %309 = vst [vmem:[%s6 + $0x10] sm:$0xff] %v301
    %310 = vst [vmem:[%s6 + $0x18] sm:$0xff] %v302
    %311 = vst [vmem:[%s7] sm:$0xff] %v303
    %312 = vst [vmem:[%s7 + $0x8] sm:$0xff] %v304
    %313 = vst [vmem:[%s7 + $0x10] sm:$0xff] %v305
    %314 = vst [vmem:[%s7 + $0x18] sm:$0xff] %v306
    %v315 = vld [vmem:[%s3] sm:$0xff]
    %v316 = vld [vmem:[%s3 + $0x8] sm:$0xff]
    %v317 = vld [vmem:[%s3 + $0x10] sm:$0xff]
    %v318 = vld [vmem:[%s3 + $0x18] sm:$0xff]
    %v319 = vld [vmem:[%s3 + $0x20] sm:$0xff]
    %v320 = vld [vmem:[%s3 + $0x28] sm:$0xff]
    %v321 = vld [vmem:[%s3 + $0x30] sm:$0xff]
    %v322 = vld [vmem:[%s3 + $0x38] sm:$0xff]
    %v323 = vld [vmem:[%s3 + $0x40] sm:$0xff]
    %v324 = vld [vmem:[%s3 + $0x48] sm:$0xff]
    %v325 = vld [vmem:[%s3 + $0x50] sm:$0xff]
    %v326 = vld [vmem:[%s3 + $0x58] sm:$0xff]
    %v327 = vld [vmem:[%s3 + $0x60] sm:$0xff]
    %v328 = vld [vmem:[%s3 + $0x68] sm:$0xff]
    %v329 = vld [vmem:[%s3 + $0x70] sm:$0xff]
    %v330 = vld [vmem:[%s3 + $0x78] sm:$0xff]
    %v331 = vld [vmem:[%s3 + $0x80] sm:$0xff]
    %v332 = vld [vmem:[%s3 + $0x88] sm:$0xff]
    %v333 = vld [vmem:[%s3 + $0x90] sm:$0xff]
    %v334 = vld [vmem:[%s3 + $0x98] sm:$0xff]
    %v335 = vld [vmem:[%s3 + $0xa0] sm:$0xff]
    %v336 = vld [vmem:[%s3 + $0xa8] sm:$0xff]
    %v337 = vld [vmem:[%s3 + $0xb0] sm:$0xff]
    %v338 = vld [vmem:[%s3 + $0xb8] sm:$0xff]
    %v339 = vld [vmem:[%s3 + $0xc0] sm:$0xff]
    %v340 = vld [vmem:[%s3 + $0xc8] sm:$0xff]
    %v341 = vld [vmem:[%s3 + $0xd0] sm:$0xff]
    %v342 = vld [vmem:[%s3 + $0xd8] sm:$0xff]
    %v343 = vld [vmem:[%s3 + $0xe0] sm:$0xff]
    %v344 = vld [vmem:[%s3 + $0xe8] sm:$0xff]
    %v345 = vld [vmem:[%s3 + $0xf0] sm:$0xff]
    %v346 = vld [vmem:[%s3 + $0xf8] sm:$0xff]
    %v347 = vld [vmem:[%s4] sm:$0x1]
    %v349 = vperm.slane %v347, 0
    %351 = vmatpush.msra.mxu0 %v330
    %352 = vmatpush.msra.mxu0 %v329
    %353 = vmatpush.msra.mxu0 %v328
    %354 = vmatpush.msra.mxu0 %v327
    %355 = vmatpush.msra.mxu0 %v326
    %356 = vmatpush.msra.mxu0 %v325
    %357 = vmatpush.msra.mxu0 %v324
    %358 = vmatpush.msra.mxu0 %v323
    %359 = vmatpush.msra.mxu0 %v322
    %360 = vmatpush.msra.mxu0 %v321
    %361 = vmatpush.msra.mxu0 %v320
    %362 = vmatpush.msra.mxu0 %v319
    %363 = vmatpush.msra.mxu0 %v318
    %364 = vmatpush.msra.mxu0 %v317
    %365 = vmatpush.msra.mxu0 %v316
    %366 = vmatpush.msra.mxu0 %v315
    %367 = vmatmul.f32.gmra.mxu0 %v299
    %v368 = vpop.f32.mrf.mxu0
    %v369 = vadd.f32 %v349, %v368
    %370 = vmatmul.f32.gmra.mxu0 %v300
    %v371 = vpop.f32.mrf.mxu0
    %v372 = vadd.f32 %v349, %v371
    %373 = vmatmul.f32.gmra.mxu0 %v301
    %v374 = vpop.f32.mrf.mxu0
    %v375 = vadd.f32 %v349, %v374
    %376 = vmatmul.f32.gmra.mxu0 %v302
    %v377 = vpop.f32.mrf.mxu0
    %v378 = vadd.f32 %v349, %v377
    %379 = vdwg.mxu0
    %380 = vmatpush.msra.mxu0 %v346
    %381 = vmatpush.msra.mxu0 %v345
    %382 = vmatpush.msra.mxu0 %v344
    %383 = vmatpush.msra.mxu0 %v343
    %384 = vmatpush.msra.mxu0 %v342
    %385 = vmatpush.msra.mxu0 %v341
    %386 = vmatpush.msra.mxu0 %v340
    %387 = vmatpush.msra.mxu0 %v339
    %388 = vmatpush.msra.mxu0 %v338
    %389 = vmatpush.msra.mxu0 %v337
    %390 = vmatpush.msra.mxu0 %v336
    %391 = vmatpush.msra.mxu0 %v335
    %392 = vmatpush.msra.mxu0 %v334
    %393 = vmatpush.msra.mxu0 %v333
    %394 = vmatpush.msra.mxu0 %v332
    %395 = vmatpush.msra.mxu0 %v331
    %396 = vmatmul.f32.gmra.mxu0 %v303
    %v397 = vpop.f32.mrf.mxu0
    %v398 = vadd.f32 %v369, %v397
    %399 = vmatmul.f32.gmra.mxu0 %v304
    %v400 = vpop.f32.mrf.mxu0
    %v401 = vadd.f32 %v372, %v400
    %402 = vmatmul.f32.gmra.mxu0 %v305
    %v403 = vpop.f32.mrf.mxu0
    %v404 = vadd.f32 %v375, %v403
    %405 = vmatmul.f32.gmra.mxu0 %v306
    %v406 = vpop.f32.mrf.mxu0
    %v407 = vadd.f32 %v378, %v406
    %408 = vdwg.mxu0
    %v409 = vld [vmem:[%s1] sm:$0xff]
    %v410 = vld [vmem:[%s1 + $0x8] sm:$0xff]
    %v411 = vld [vmem:[%s1 + $0x10] sm:$0xff]
    %v412 = vld [vmem:[%s1 + $0x18] sm:$0xff]
    %vm413 = vcmask 261120
    %v414 = vsel %vm413, %v409, 0.0
    %415 = vadd.xlane.f32.xlu0 %v414
    %v416 = vpop.xlane.xlu0 %415
    %v417 = vsel %vm413, %v410, 0.0
    %418 = vadd.xlane.f32.xlu0 %v417
    %v419 = vpop.xlane.xlu0 %418
    %v420 = vsel %vm413, %v411, 0.0
    %421 = vadd.xlane.f32.xlu0 %v420
    %v422 = vpop.xlane.xlu0 %421
    %v423 = vsel %vm413, %v412, 0.0
    %424 = vadd.xlane.f32.xlu0 %v423
    %v425 = vpop.xlane.xlu0 %424
    %v426 = vadd.f32 %v416, 1.0
    %v427 = vadd.f32 %v419, 1.0
    %v428 = vadd.f32 %v422, 1.0
    %v429 = vadd.f32 %v425, 1.0
    %v430 = vrsqrt.pop %v426
    %v431 = vmul.f32 %v430, %v426
    %v432 = vmul.f32 %v431, %v430
    %v433 = vmul.f32 0.5, %v432
    %v434 = vsub.f32 1.5, %v433
    %v435 = vmul.f32 %v430, %v434
    %vm436 = vweird.f32 %v426
    %vm437 = vweird.f32 %v430
    %vm438 = vmor %vm436, %vm437
    %v439 = vsel %vm438, %v430, %v435
    %v440 = vrsqrt.pop %v427
    %v441 = vmul.f32 %v440, %v427
    %v442 = vmul.f32 %v441, %v440
    %v443 = vmul.f32 0.5, %v442
    %v444 = vsub.f32 1.5, %v443
    %v445 = vmul.f32 %v440, %v444
    %vm446 = vweird.f32 %v427
    %vm447 = vweird.f32 %v440
    %vm448 = vmor %vm446, %vm447
    %v449 = vsel %vm448, %v440, %v445
    %v450 = vrsqrt.pop %v428
    %v451 = vmul.f32 %v450, %v428
    %v452 = vmul.f32 %v451, %v450
    %v453 = vmul.f32 0.5, %v452
    %v454 = vsub.f32 1.5, %v453
    %v455 = vmul.f32 %v450, %v454
    %vm456 = vweird.f32 %v428
    %vm457 = vweird.f32 %v450
    %vm458 = vmor %vm456, %vm457
    %v459 = vsel %vm458, %v450, %v455
    %v460 = vrsqrt.pop %v429
    %v461 = vmul.f32 %v460, %v429
    %v462 = vmul.f32 %v461, %v460
    %v463 = vmul.f32 0.5, %v462
    %v464 = vsub.f32 1.5, %v463
    %v465 = vmul.f32 %v460, %v464
    %vm466 = vweird.f32 %v429
    %vm467 = vweird.f32 %v460
    %vm468 = vmor %vm466, %vm467
    %v469 = vsel %vm468, %v460, %v465
    %v470 = vmul.f32 %v439, %v398
    %v471 = vmul.f32 %v449, %v401
    %v472 = vmul.f32 %v459, %v404
    %v473 = vmul.f32 %v469, %v407
    %v475 = vsel %vm413, %v409, 0
    %v478 = vsel %vm413, %v410, 0
    %v481 = vsel %vm413, %v411, 0
    %v484 = vsel %vm413, %v412, 0
    %486 = vmatpush.msra.mxu0 0.0
    %487 = vmatpush.msra.mxu0 0.0
    %488 = vmatpush.msra.mxu0 0.0
    %489 = vmatpush.msra.mxu0 0.0
    %490 = vmatpush.msra.mxu0 0.0
    %491 = vmatpush.msra.mxu0 0.0
    %492 = vmatpush.msra.mxu0 0.0
    %493 = vmatpush.msra.mxu0 0.0
    %494 = vmatpush.msra.mxu0 0.0
    %495 = vmatpush.msra.mxu0 0.0
    %496 = vmatpush.msra.mxu0 0.0
    %497 = vmatpush.msra.mxu0 0.0
    %498 = vmatpush.msra.mxu0 %v473
    %499 = vmatpush.msra.mxu0 %v472
    %500 = vmatpush.msra.mxu0 %v471
    %501 = vmatpush.msra.mxu0 %v470
    %502 = vmatmul.f32.gmra.mxu0 %v475
    %v503 = vpop.f32.mrf.mxu0
    %v504 = vadd.f32 %v470, %v503
    %505 = vmatmul.f32.gmra.mxu0 %v478
    %v506 = vpop.f32.mrf.mxu0
    %v507 = vadd.f32 %v471, %v506
    %508 = vmatmul.f32.gmra.mxu0 %v481
    %v509 = vpop.f32.mrf.mxu0
    %v510 = vadd.f32 %v472, %v509
    %511 = vmatmul.f32.gmra.mxu0 %v484
    %v512 = vpop.f32.mrf.mxu0
    %v513 = vadd.f32 %v473, %v512
    %514 = vdwg.mxu0
    %v515 = vmul.f32 %v439, %v504
    %v516 = vmul.f32 %v449, %v507
    %v517 = vmul.f32 %v459, %v510
    %v518 = vmul.f32 %v469, %v513
    %v519 = vmax.f32 %v515, 0.0
    %v520 = vmax.f32 %v516, 0.0
    %v521 = vmax.f32 %v517, 0.0
    %v522 = vmax.f32 %v518, 0.0
    %v523 = vmul.f32 %v439, %v519
    %v524 = vmul.f32 %v449, %v520
    %v525 = vmul.f32 %v459, %v521
    %v526 = vmul.f32 %v469, %v522
    %527 = vmatpush.msra.mxu0 0.0
    %528 = vmatpush.msra.mxu0 0.0
    %529 = vmatpush.msra.mxu0 0.0
    %530 = vmatpush.msra.mxu0 0.0
    %531 = vmatpush.msra.mxu0 0.0
    %532 = vmatpush.msra.mxu0 0.0
    %533 = vmatpush.msra.mxu0 0.0
    %534 = vmatpush.msra.mxu0 0.0
    %535 = vmatpush.msra.mxu0 0.0
    %536 = vmatpush.msra.mxu0 0.0
    %537 = vmatpush.msra.mxu0 0.0
    %538 = vmatpush.msra.mxu0 0.0
    %539 = vmatpush.msra.mxu0 %v526
    %540 = vmatpush.msra.mxu0 %v525
    %541 = vmatpush.msra.mxu0 %v524
    %542 = vmatpush.msra.mxu0 %v523
    %543 = vmatmul.f32.gmra.mxu0 %v475
    %v544 = vpop.f32.mrf.mxu0
    %v545 = vadd.f32 %v523, %v544
    %546 = vmatmul.f32.gmra.mxu0 %v478
    %v547 = vpop.f32.mrf.mxu0
    %v548 = vadd.f32 %v524, %v547
    %549 = vmatmul.f32.gmra.mxu0 %v481
    %v550 = vpop.f32.mrf.mxu0
    %v551 = vadd.f32 %v525, %v550
    %552 = vmatmul.f32.gmra.mxu0 %v484
    %v553 = vpop.f32.mrf.mxu0
    %v554 = vadd.f32 %v526, %v553
    %555 = vdwg.mxu0
    %v556 = vmul.f32 %v439, %v545
    %v557 = vmul.f32 %v449, %v548
    %v558 = vmul.f32 %v459, %v551
    %v559 = vmul.f32 %v469, %v554
    %v560 = vmax.f32 %v556, 0.0
    %v561 = vmax.f32 %v557, 0.0
    %v562 = vmax.f32 %v558, 0.0
    %v563 = vmax.f32 %v559, 0.0
    %564 = vst [vmem:[#allocation2] sm:$0xff] %v560
    %565 = vst [vmem:[#allocation2 + $0x8] sm:$0xff] %v561
    %566 = vst [vmem:[#allocation2 + $0x10] sm:$0xff] %v562
    %567 = vst [vmem:[#allocation2 + $0x18] sm:$0xff] %v563
    // Predicated region
    $region22: #{gae_forward.1} parent=1 // pred_check
      _
    $region23: #{gae_forward.1} parent=1 // pred_check_branch
      %569 = sbr.rel (0) target = $region25
    $region24: #{gae_forward.1} parent=1 // pred_region
      %571 = vsyncadd [#allocation3], 0
      %s572 = sshll.u32 [#allocation2], 4
      %s573 = int_to_ptr.vmem [resolvable:$true] %s572
      %s574 = sshll.u32 %s5, 4
      %s575 = int_to_ptr.hbm [resolvable:$true] %s574
      %580 = dma.vmem_to_hbm [thread:$0]  %s573, 512, %s575, [#allocation3], 128, 128, 8
    $region25: #{gae_forward.1} parent=1 // pred_fallthru
      _
    // Predicated region
    $region26: #{gae_forward.1} parent=1 // pred_check
      _
    $region27: #{gae_forward.1} parent=1 // pred_check_branch
      %582 = sbr.rel (0) target = $region29
    $region28: #{gae_forward.1} parent=1 // pred_region
      _
    $region29: #{gae_forward.1} parent=1 // pred_fallthru
      _
    // Predicated region
    $region30: #{gae_forward.1} parent=1 // pred_check
      _
    $region31: #{gae_forward.1} parent=1 // pred_check_branch
      %584 = sbr.rel (0) target = $region33
    $region32: #{gae_forward.1} parent=1 // pred_region
      _
    $region33: #{gae_forward.1} parent=1 // pred_fallthru
      _
    // Predicated region
    $region34: #{gae_forward.1} parent=1 // pred_check
      _
    $region35: #{gae_forward.1} parent=1 // pred_check_branch
      %586 = sbr.rel (0) target = $region37
    $region36: #{gae_forward.1} parent=1 // pred_region
      %588 = dma.done [#allocation3], 512
    $region37: #{gae_forward.1} parent=1 // pred_fallthru
      _
    // Predicated region
    $region38: #{gae_forward.1} parent=1 // pred_check
      _
    $region39: #{gae_forward.1} parent=1 // pred_check_branch
      %590 = sbr.rel (0) target = $region41
    $region40: #{gae_forward.1} parent=1 // pred_region
      _
    $region41: #{gae_forward.1} parent=1 // pred_fallthru
      _
    // Predicated region
    $region42: #{gae_forward.1} parent=1 // pred_check
      _
    $region43: #{gae_forward.1} parent=1 // pred_check_branch
      %592 = sbr.rel (0) target = $region45
    $region44: #{gae_forward.1} parent=1 // pred_region
      _
    $region45: #{gae_forward.1} parent=1 // pred_fallthru
      _
    %593 = vsyncpa [#allocation3], 1

</llo_original>
